<compile_context>
chip_gen: v5e
topology: v5e:2x2
jax: 0.10.0
libtpu: 0.0.40
codegen_flags: <defaults>
</compile_context>

<pallas_src>
import functools

import jax
import jax.numpy as jnp
from jax import lax
from jax.experimental import pallas as pl
from jax.experimental.pallas import tpu as pltpu


def _round_up(x, m):
    return ((x + m - 1) // m) * m


def _vmem_budget_bytes():
    """Generation-aware VMEM budget: ~75% of physical, capped at 100 MiB.

    v5e/v6e (128 MiB physical) -> 96 MiB;  v7x (64 MiB physical) -> 48 MiB.
    Falls back to the conservative v7x value if the query is unavailable."""
    try:
        phys = int(pltpu.get_tpu_info().vmem_capacity_bytes)
    except Exception:
        phys = 64 * 1024 * 1024
    return min(phys * 3 // 4, 100 * 1024 * 1024)


def _auto_tile_n(C, n_lane, budget):
    """Largest lane-dense spatial tile such that ~8 f32 (C,Tn) live buffers
    (double-buffered in/out + intermediates) stay well inside the budget."""
    per_col_bytes = 8 * C * 4
    tn = (budget // (2 * per_col_bytes)) // 128 * 128
    return int(max(128, min(tn, 8192, n_lane)))


# ---------------------------------------------------------------------------
# Fused single-pass kernel: whole (C, N) image resident, grid = (B,).
# ---------------------------------------------------------------------------
def _pam_fused_kernel(x_ref, w_ref, b_ref, gamma_ref, o_ref, *, C, Cq, n_true, eps):
    X = x_ref[0]                                                       # (C, N)
    # Stacked [V; K; Q] 1x1 convs == one channel-mixing MXU matmul.
    Y = jnp.dot(w_ref[...], X, preferred_element_type=jnp.float32) + b_ref[...]
    V = Y[:C]                                                          # (C,  N)
    K = Y[C:C + Cq]                                                    # (Cq, N)
    Q = Y[C + Cq:]                                                     # (Cq, N)

    Kn = K * lax.rsqrt(jnp.sum(K * K, axis=0, keepdims=True))          # EUP rsqrt
    Qn = Q * lax.rsqrt(jnp.sum(Q * Q, axis=0, keepdims=True))

    ksum = jnp.sum(Kn, axis=1, keepdims=True)                          # (Cq, 1)
    vsum = jnp.sum(V, axis=1, keepdims=True)                           # (C,  1)
    # matrix[m, c] = sum_n Kn[m, n] * V[c, n]   (no explicit transpose)
    matrix = lax.dot_general(Kn, V, (((1,), (1,)), ((), ())),
                             preferred_element_type=jnp.float32)       # (Cq, C)
    denom = jnp.float32(n_true) + jnp.sum(Qn * (ksum + jnp.float32(eps)),
                                          axis=0, keepdims=True)       # (1, N)
    # temp[c, n] = sum_m matrix[m, c] * Qn[m, n]
    temp = lax.dot_general(matrix, Qn, (((0,), (0,)), ((), ())),
                           preferred_element_type=jnp.float32)         # (C, N)
    tailor = pl.reciprocal(denom, approx=False)
    o_ref[0] = X + gamma_ref[0] * ((vsum + temp) * tailor)


# ---------------------------------------------------------------------------
# Tiled pass 1: accumulate [matrix | ksum] and vsum over spatial tiles.
#   Weight stack is [wv ; 0-row ; wk] with bias [bv ; 1 ; bk], so rows 0..C
#   of Y are V, row C is a constant ones row, rows C+1.. are K.  The ones row
#   rides along in the matmul and yields ksum for free.
# ---------------------------------------------------------------------------
def _pam_stats_kernel(x_ref, w_ref, b_ref, mk_ref, vs_ref, *,
                      C, n_true, tn, tail_masked):
    nt = pl.program_id(1)

    @pl.when(nt == 0)
    def _():
        mk_ref[...] = jnp.zeros_like(mk_ref)
        vs_ref[...] = jnp.zeros_like(vs_ref)

    X = x_ref[0]                                                       # (C, Tn)
    Y = jnp.dot(w_ref[...], X, preferred_element_type=jnp.float32) + b_ref[...]

    def accumulate(V_aug, Kn):
        # mk[m, :C] = matrix, mk[m, C] = ksum  (ones row of V_aug)
        mk_ref[0] += lax.dot_general(Kn, V_aug, (((1,), (1,)), ((), ())),
                                     preferred_element_type=jnp.float32)
        vs_ref[0] += jnp.sum(V_aug[:C], axis=1, keepdims=True)

    def normalize(K):
        return K * lax.rsqrt(jnp.sum(K * K, axis=0, keepdims=True))

    if tail_masked:
        is_tail = nt == pl.num_programs(1) - 1

        @pl.when(jnp.logical_not(is_tail))
        def _():
            accumulate(Y[:C + 1], normalize(Y[C + 1:]))

        @pl.when(is_tail)
        def _():
            # Only the tail tile pays for the iota + selects.
            col = lax.broadcasted_iota(jnp.int32, (1, tn), 1) + nt * tn
            valid = col < n_true
            K = Y[C + 1:]
            ksq = jnp.where(valid, jnp.sum(K * K, axis=0, keepdims=True), 1.0)
            Kn = jnp.where(valid, K * lax.rsqrt(ksq), 0.0)
            accumulate(jnp.where(valid, Y[:C + 1], 0.0), Kn)
    else:
        accumulate(Y[:C + 1], normalize(Y[C + 1:]))


# ---------------------------------------------------------------------------
# Tiled pass 2: one stacked matmul per tile.
#   Y = [Wq ; gamma*matrix^T@Wq ; (ksum+eps)^T@Wq] @ X + stacked biases
#   -> rows 0..Cq     : Q          (for the column norm)
#      rows Cq..Cq+C  : gamma * matrix^T @ Q
#      last row       : (ksum+eps)^T @ Q
#   temp / denom recovered by scaling with rsqrt(|Q|^2) per column.
# ---------------------------------------------------------------------------
def _pam_out_kernel(x_ref, w_ref, b_ref, vs_ref, o_ref, *, C, Cq, n_true):
    X = x_ref[0]                                                       # (C, Tn)
    Y = jnp.dot(w_ref[0], X, preferred_element_type=jnp.float32) + b_ref[0]
    Q = Y[:Cq]                                                         # (Cq, Tn)
    Tg = Y[Cq:Cq + C]                                                  # (C,  Tn)
    D = Y[Cq + C:]                                                     # (1,  Tn)
    rs = lax.rsqrt(jnp.sum(Q * Q, axis=0, keepdims=True))              # (1, Tn)
    tailor = pl.reciprocal(jnp.float32(n_true) + D * rs, approx=False)
    # vs_ref already holds gamma * vsum; Tg already carries gamma.
    o_ref[0] = X + (vs_ref[0] + Tg * rs) * tailor


# ---------------------------------------------------------------------------
# Wrapper
# ---------------------------------------------------------------------------
def pam_forward(x, params, *, eps=1e-6, tile_n=None, force_tiled=False,
                vmem_budget=None):
    """x: (B, C, W, H) NCHW with W == H (as required by the torch module).

    params: (wq (Cq,C), bq (Cq,1), wk (Cq,C), bk (Cq,1), wv (C,C), bv (C,1),
             gamma (1,)) — 1x1 conv weights flattened to (Cout, Cin)."""
    wq, bq, wk, bk, wv, bv, gamma = params
    B, C, W, H = x.shape
    N = W * H
    Cq = wq.shape[0]
    f32 = jnp.float32

    x_flat = x.reshape(B, C, N).astype(f32)
    budget = int(vmem_budget) if vmem_budget is not None else _vmem_budget_bytes()
    n_lane = _round_up(N, 128)

    # ------------------------- fused single-pass path -----------------------
    fused_bytes = 10 * C * n_lane * 4       # 2x in + 2x out + intermediates
    if (not force_tiled) and fused_bytes <= budget:
        w_all = jnp.concatenate([wv, wk, wq], axis=0).astype(f32)      # (C+2Cq, C)
        b_all = jnp.concatenate([bv, bk, bq], axis=0).astype(f32)      # (C+2Cq, 1)
        gamma_s = jnp.asarray(gamma, f32).reshape(1)

        out_flat = pl.pallas_call(
            functools.partial(_pam_fused_kernel, C=C, Cq=Cq, n_true=N, eps=eps),
            out_shape=jax.ShapeDtypeStruct((B, C, N), f32),
            grid_spec=pltpu.PrefetchScalarGridSpec(
                num_scalar_prefetch=0,
                grid=(B,),
                in_specs=[
                    pl.BlockSpec((1, C, N), lambda b: (b, 0, 0)),       # x
                    pl.BlockSpec((C + 2 * Cq, C), lambda b: (0, 0)),    # [wv;wk;wq]
                    pl.BlockSpec((C + 2 * Cq, 1), lambda b: (0, 0)),    # biases
                    pl.BlockSpec(memory_space=pltpu.MemorySpace.SMEM),  # gamma
                ],
                out_specs=pl.BlockSpec((1, C, N), lambda b: (b, 0, 0)),
            ),
            compiler_params=pltpu.CompilerParams(
                dimension_semantics=("parallel",),
                vmem_limit_bytes=budget),
        )(x_flat, w_all, b_all, gamma_s)
        return out_flat.reshape(B, C, W, H).astype(x.dtype)

    # ----------------------------- tiled two-pass ---------------------------
    Tn = tile_n if tile_n is not None else _auto_tile_n(C, n_lane, budget)
    Tn = int(min(n_lane, _round_up(int(Tn), 128)))
    if Tn >= N:                 # single (full-extent) block: always legal
        Tn, num_nt, tail_masked = N, 1, False
    else:
        num_nt = pl.cdiv(N, Tn)
        tail_masked = (N % Tn) != 0

    # Pass 1 weight stack: [wv ; 0-row ; wk], bias [bv ; 1 ; bk].
    w_vko = jnp.concatenate([wv, jnp.zeros((1, C), f32), wk], axis=0).astype(f32)
    b_vko = jnp.concatenate([bv, jnp.ones((1, 1), f32), bk], axis=0).astype(f32)

    mk, vs = pl.pallas_call(
        functools.partial(_pam_stats_kernel, C=C, n_true=N, tn=Tn,
                          tail_masked=tail_masked),
        out_shape=(jax.ShapeDtypeStruct((B, Cq, C + 1), f32),
                   jax.ShapeDtypeStruct((B, C, 1), f32)),
        grid_spec=pltpu.PrefetchScalarGridSpec(
            num_scalar_prefetch=0,
            grid=(B, num_nt),
            in_specs=[
                pl.BlockSpec((1, C, Tn), lambda b, n: (b, 0, n)),        # x tile
                pl.BlockSpec((C + 1 + Cq, C), lambda b, n: (0, 0)),      # weights
                pl.BlockSpec((C + 1 + Cq, 1), lambda b, n: (0, 0)),      # biases
            ],
            out_specs=[
                pl.BlockSpec((1, Cq, C + 1), lambda b, n: (b, 0, 0)),    # [matrix|ksum]
                pl.BlockSpec((1, C, 1), lambda b, n: (b, 0, 0)),         # vsum
            ],
        ),
        compiler_params=pltpu.CompilerParams(
            dimension_semantics=("parallel", "arbitrary"),
            vmem_limit_bytes=budget),
    )(x_flat, w_vko, b_vko)

    matrix = mk[:, :, :C]                                               # (B, Cq, C)
    ksum = mk[:, :, C:C + 1]                                            # (B, Cq, 1)
    vsum = vs                                                           # (B, C,  1)

    # Fold matrix^T, the denominator row and gamma into the pass-2 weights
    # (tiny per-batch einsums, run as plain XLA between the two kernels).
    g = jnp.asarray(gamma, f32).reshape(())
    wq32, bq32 = wq.astype(f32), bq.astype(f32)
    w_fold = g * jnp.einsum('bmc,mk->bck', matrix, wq32)                # (B, C, C)
    b_fold = g * jnp.einsum('bmc,mo->bco', matrix, bq32)                # (B, C, 1)
    kv = ksum + jnp.float32(eps)
    w_den = jnp.einsum('bmo,mk->bok', kv, wq32)                         # (B, 1, C)
    b_den = jnp.einsum('bmo,mp->bop', kv, bq32)                         # (B, 1, 1)
    w_stk = jnp.concatenate(
        [jnp.broadcast_to(wq32[None], (B, Cq, C)), w_fold, w_den], axis=1)
    b_stk = jnp.concatenate(
        [jnp.broadcast_to(bq32[None], (B, Cq, 1)), b_fold, b_den], axis=1)
    vsum_g = g * vsum                                                   # (B, C, 1)

    out_flat = pl.pallas_call(
        functools.partial(_pam_out_kernel, C=C, Cq=Cq, n_true=N),
        out_shape=jax.ShapeDtypeStruct((B, C, N), f32),
        grid_spec=pltpu.PrefetchScalarGridSpec(
            num_scalar_prefetch=0,
            grid=(B, num_nt),
            in_specs=[
                pl.BlockSpec((1, C, Tn), lambda b, n: (b, 0, n)),        # x tile
                pl.BlockSpec((1, Cq + C + 1, C), lambda b, n: (b, 0, 0)),
                pl.BlockSpec((1, Cq + C + 1, 1), lambda b, n: (b, 0, 0)),
                pl.BlockSpec((1, C, 1), lambda b, n: (b, 0, 0)),         # gamma*vsum
            ],
            out_specs=pl.BlockSpec((1, C, Tn), lambda b, n: (b, 0, n)),
        ),
        compiler_params=pltpu.CompilerParams(
            dimension_semantics=("parallel", "parallel"),
            vmem_limit_bytes=budget),
    )(x_flat, w_stk, b_stk, vsum_g)
    return out_flat.reshape(B, C, W, H).astype(x.dtype)


# ----------------------- pure-JAX reference (for checking) ------------------
def _l2_norm_ref(t):  # t: (B, C, N), normalize over channel axis
    return t * (1.0 / jnp.linalg.norm(t, axis=-2, keepdims=True))


def pam_reference(x, params, *, eps=1e-6):
    wq, bq, wk, bk, wv, bv, gamma = params
    B, C, W, H = x.shape
    N = W * H
    xf = x.reshape(B, C, N).astype(jnp.float32)
    Q = jnp.einsum('oc,bcn->bon', wq, xf) + bq[None, :, :]
    K = jnp.einsum('oc,bcn->bon', wk, xf) + bk[None, :, :]
    V = jnp.einsum('oc,bcn->bon', wv, xf) + bv[None, :, :]
    Qn = _l2_norm_ref(Q).transpose(0, 2, 1)          # (B, N, Cq)
    Kn = _l2_norm_ref(K)                             # (B, Cq, N)
    tailor = 1.0 / (N + jnp.einsum('bnc,bc->bn', Qn, jnp.sum(Kn, -1) + eps))
    value_sum = jnp.sum(V, -1)[..., None]            # (B, C, 1)
    matrix = jnp.einsum('bmn,bcn->bmc', Kn, V)       # (B, Cq, C)
    matrix_sum = value_sum + jnp.einsum('bnm,bmc->bcn', Qn, matrix)
    weight_value = matrix_sum * tailor[:, None, :]
    out = xf + gamma.reshape(()) * weight_value
    return out.reshape(B, C, W, H)


def _expect_close(name, got, want, atol=5e-4, rtol=5e-4):
    if not bool(jnp.allclose(got, want, atol=atol, rtol=rtol)):
        err = float(jnp.max(jnp.abs(got - want)))
        raise AssertionError(f"{name}: mismatch vs reference, max abs err {err:.3e}")


if __name__ == "__main__":
    B, C, scale = 2, 32, 8            # in_places=32, scale=8 -> Cq=4
    Cq = C // scale

    key = jax.random.PRNGKey(0)
    kx, k1, k2, k3, k4, k5, k6, kx2, kx3 = jax.random.split(key, 9)

    # Deterministic synthetic parameters (1x1 conv weights as (Cout, Cin)).
    wq = 0.1 * jax.random.normal(k1, (Cq, C), jnp.float32)
    bq = 0.1 * jax.random.normal(k2, (Cq, 1), jnp.float32)
    wk = 0.1 * jax.random.normal(k3, (Cq, C), jnp.float32)
    bk = 0.1 * jax.random.normal(k4, (Cq, 1), jnp.float32)
    wv = 0.1 * jax.random.normal(k5, (C, C), jnp.float32)
    bv = 0.1 * jax.random.normal(k6, (C, 1), jnp.float32)

    gamma0 = jnp.zeros((1,), jnp.float32)        # module-faithful init
    gamma1 = jnp.full((1,), 0.5, jnp.float32)

    # ---- case 1: 16x16 (N = 256), fused path ----
    x = jax.random.normal(kx, (B, C, 16, 16), jnp.float32)
    out0 = jax.block_until_ready(pam_forward(x, (wq, bq, wk, bk, wv, bv, gamma0)))
    assert bool(jnp.allclose(out0, x, atol=1e-5)), "gamma=0 path should return x"

    out1 = jax.block_until_ready(pam_forward(x, (wq, bq, wk, bk, wv, bv, gamma1)))
    _expect_close("fused 16x16", out1, pam_reference(x, (wq, bq, wk, bk, wv, bv, gamma1)))

    # ---- case 2: 10x10 (N = 100, non-128-aligned), fused path ----
    x2 = jax.random.normal(kx2, (B, C, 10, 10), jnp.float32)
    out2 = jax.block_until_ready(pam_forward(x2, (wq, bq, wk, bk, wv, bv, gamma1)))
    _expect_close("fused 10x10", out2, pam_reference(x2, (wq, bq, wk, bk, wv, bv, gamma1)))

    # ---- case 3: 16x16, forced tiled path (2 full tiles, no masking) ----
    out3 = jax.block_until_ready(
        pam_forward(x, (wq, bq, wk, bk, wv, bv, gamma1), force_tiled=True, tile_n=128))
    _expect_close("tiled 16x16", out3, pam_reference(x, (wq, bq, wk, bk, wv, bv, gamma1)))

    # ---- case 4: 12x12 (N = 144), forced tiled path (partial tail tile) ----
    x3 = jax.random.normal(kx3, (B, C, 12, 12), jnp.float32)
    out4 = jax.block_until_ready(
        pam_forward(x3, (wq, bq, wk, bk, wv, bv, gamma1), force_tiled=True, tile_n=128))
    _expect_close("tiled 12x12", out4, pam_reference(x3, (wq, bq, wk, bk, wv, bv, gamma1)))

    print("KERNEL_OK")
</pallas_src>

<mosaic_0001>
module attributes {stable_mosaic.version = 11 : i64} {
  func.func @_pam_fused_kernel(%arg0: i32, %arg1: memref<1x32x256xf32, #tpu.memory_space<vmem>>, %arg2: memref<40x32xf32, #tpu.memory_space<vmem>>, %arg3: memref<40x1xf32, #tpu.memory_space<vmem>>, %arg4: memref<1xf32, #tpu.memory_space<smem>>, %arg5: memref<1x32x256xf32, #tpu.memory_space<vmem>>) attributes {dimension_semantics = [#tpu.dimension_semantics<parallel>], iteration_bounds = array<i64: 2>, scalar_prefetch = 0 : i64, scratch_operands = 0 : i64, tpu.core_type = #tpu.core_type<tc>, window_params = [{transform_indices = @transform_0, window_bounds = array<i64: 1, 32, 256>}, {pipeline_mode = #tpu.pipeline_mode<synchronous>, transform_indices = @transform_1, window_bounds = array<i64: 40, 32>}, {pipeline_mode = #tpu.pipeline_mode<synchronous>, transform_indices = @transform_2, window_bounds = array<i64: 40, 1>}, {transform_indices = @transform_3, window_bounds = array<i64: 1>}, {transform_indices = @transform_4, window_bounds = array<i64: 1, 32, 256>}]} {
    %c0 = arith.constant 0 : index
    %c0_0 = arith.constant 0 : index
    %c0_1 = arith.constant 0 : index
    %0 = vector.load %arg1[%c0, %c0_0, %c0_1] : memref<1x32x256xf32, #tpu.memory_space<vmem>>, vector<1x32x256xf32>
    %1 = vector.shape_cast %0 : vector<1x32x256xf32> to vector<32x256xf32>
    %c0_2 = arith.constant 0 : index
    %c0_3 = arith.constant 0 : index
    %2 = vector.load %arg2[%c0_2, %c0_3] : memref<40x32xf32, #tpu.memory_space<vmem>>, vector<40x32xf32>
    %cst = arith.constant dense<0.000000e+00> : vector<40x256xf32>
    %3 = tpu.matmul %2, %1, %cst {dimension_numbers = #tpu.dot_dimension_numbers<[1], [0], [0], [1], [0, 0, 1, 1], [], []>} : vector<40x32xf32>, vector<32x256xf32>, vector<40x256xf32> -> vector<40x256xf32>
    %c0_4 = arith.constant 0 : index
    %c0_5 = arith.constant 0 : index
    %4 = vector.load %arg3[%c0_4, %c0_5] : memref<40x1xf32, #tpu.memory_space<vmem>>, vector<40x1xf32>
    %5 = vector.broadcast %4 : vector<40x1xf32> to vector<40x256xf32>
    %6 = arith.addf %3, %5 : vector<40x256xf32>
    %7 = vector.extract_strided_slice %6 {offsets = [0, 0], sizes = [32, 256], strides = [1, 1]} : vector<40x256xf32> to vector<32x256xf32>
    %8 = vector.extract_strided_slice %6 {offsets = [32, 0], sizes = [4, 256], strides = [1, 1]} : vector<40x256xf32> to vector<4x256xf32>
    %9 = vector.extract_strided_slice %6 {offsets = [36, 0], sizes = [4, 256], strides = [1, 1]} : vector<40x256xf32> to vector<4x256xf32>
    %10 = arith.mulf %8, %8 : vector<4x256xf32>
    %cst_6 = arith.constant dense<0.000000e+00> : vector<256xf32>
    %11 = vector.multi_reduction <add>, %10, %cst_6 [0] : vector<4x256xf32> to vector<256xf32>
    %12 = vector.shape_cast %11 : vector<256xf32> to vector<1x256xf32>
    %13 = math.rsqrt %12 : vector<1x256xf32>
    %14 = vector.broadcast %13 : vector<1x256xf32> to vector<4x256xf32>
    %15 = arith.mulf %8, %14 : vector<4x256xf32>
    %16 = arith.mulf %9, %9 : vector<4x256xf32>
    %cst_7 = arith.constant dense<0.000000e+00> : vector<256xf32>
    %17 = vector.multi_reduction <add>, %16, %cst_7 [0] : vector<4x256xf32> to vector<256xf32>
    %18 = vector.shape_cast %17 : vector<256xf32> to vector<1x256xf32>
    %19 = math.rsqrt %18 : vector<1x256xf32>
    %20 = vector.broadcast %19 : vector<1x256xf32> to vector<4x256xf32>
    %21 = arith.mulf %9, %20 : vector<4x256xf32>
    %cst_8 = arith.constant dense<0.000000e+00> : vector<4xf32>
    %22 = vector.multi_reduction <add>, %15, %cst_8 [1] : vector<4x256xf32> to vector<4xf32>
    %23 = vector.shape_cast %22 : vector<4xf32> to vector<4x1xf32>
    %cst_9 = arith.constant dense<0.000000e+00> : vector<32xf32>
    %24 = vector.multi_reduction <add>, %7, %cst_9 [1] : vector<32x256xf32> to vector<32xf32>
    %25 = vector.shape_cast %24 : vector<32xf32> to vector<32x1xf32>
    %cst_10 = arith.constant dense<0.000000e+00> : vector<4x32xf32>
    %26 = tpu.matmul %15, %7, %cst_10 {dimension_numbers = #tpu.dot_dimension_numbers<[1], [1], [0], [0], [0, 0, 1, 0], [], []>} : vector<4x256xf32>, vector<32x256xf32>, vector<4x32xf32> -> vector<4x32xf32>
    %cst_11 = arith.constant 9.99999997E-7 : f32
    %27 = vector.broadcast %cst_11 : f32 to vector<4x1xf32>
    %28 = arith.addf %23, %27 : vector<4x1xf32>
    %29 = vector.broadcast %28 : vector<4x1xf32> to vector<4x256xf32>
    %30 = arith.mulf %21, %29 : vector<4x256xf32>
    %cst_12 = arith.constant dense<0.000000e+00> : vector<256xf32>
    %31 = vector.multi_reduction <add>, %30, %cst_12 [0] : vector<4x256xf32> to vector<256xf32>
    %32 = vector.shape_cast %31 : vector<256xf32> to vector<1x256xf32>
    %cst_13 = arith.constant 2.560000e+02 : f32
    %33 = vector.broadcast %cst_13 : f32 to vector<1x256xf32>
    %34 = arith.addf %33, %32 : vector<1x256xf32>
    %cst_14 = arith.constant dense<0.000000e+00> : vector<32x256xf32>
    %35 = tpu.matmul %26, %21, %cst_14 {dimension_numbers = #tpu.dot_dimension_numbers<[0], [0], [1], [1], [0, 1, 1, 1], [], []>} : vector<4x32xf32>, vector<4x256xf32>, vector<32x256xf32> -> vector<32x256xf32>
    %36 = tpu.reciprocal %34 : vector<1x256xf32> -> vector<1x256xf32>
    %c0_15 = arith.constant 0 : index
    %37 = memref.load %arg4[%c0_15] : memref<1xf32, #tpu.memory_space<smem>>
    %38 = vector.broadcast %25 : vector<32x1xf32> to vector<32x256xf32>
    %39 = arith.addf %38, %35 : vector<32x256xf32>
    %40 = vector.broadcast %36 : vector<1x256xf32> to vector<32x256xf32>
    %41 = arith.mulf %39, %40 : vector<32x256xf32>
    %42 = vector.broadcast %37 : f32 to vector<32x256xf32>
    %43 = arith.mulf %42, %41 : vector<32x256xf32>
    %44 = arith.addf %1, %43 : vector<32x256xf32>
    %c0_16 = arith.constant 0 : index
    %c0_17 = arith.constant 0 : index
    %c0_18 = arith.constant 0 : index
    %45 = vector.load %arg5[%c0_16, %c0_17, %c0_18] : memref<1x32x256xf32, #tpu.memory_space<vmem>>, vector<1x32x256xf32>
    %46 = vector.shape_cast %45 : vector<1x32x256xf32> to vector<32x256xf32>
    %47 = vector.shape_cast %44 : vector<32x256xf32> to vector<1x32x256xf32>
    tpu.vector_store %arg5[%c0_16, %c0_17, %c0_18], %47 {strides = array<i32>} : memref<1x32x256xf32, #tpu.memory_space<vmem>>, vector<1x32x256xf32>,
    return
  }
  func.func @transform_0(%arg0: i32) -> (i32, i32, i32) {
    %c0_i32 = arith.constant 0 : i32
    %c0_i32_0 = arith.constant 0 : i32
    %c0_i32_1 = arith.constant 0 : i32
    return %arg0, %c0_i32, %c0_i32_0 : i32, i32, i32
  }
  func.func @transform_1(%arg0: i32) -> (i32, i32) {
    %c0_i32 = arith.constant 0 : i32
    %c0_i32_0 = arith.constant 0 : i32
    %c0_i32_1 = arith.constant 0 : i32
    return %c0_i32, %c0_i32_0 : i32, i32
  }
  func.func @transform_2(%arg0: i32) -> (i32, i32) {
    %c0_i32 = arith.constant 0 : i32
    %c0_i32_0 = arith.constant 0 : i32
    %c0_i32_1 = arith.constant 0 : i32
    return %c0_i32, %c0_i32_0 : i32, i32
  }
  func.func @transform_3(%arg0: i32) -> i32 {
    %c0_i32 = arith.constant 0 : i32
    %c0_i32_0 = arith.constant 0 : i32
    return %c0_i32 : i32
  }
  func.func @transform_4(%arg0: i32) -> (i32, i32, i32) {
    %c0_i32 = arith.constant 0 : i32
    %c0_i32_0 = arith.constant 0 : i32
    %c0_i32_1 = arith.constant 0 : i32
    return %arg0, %c0_i32, %c0_i32_0 : i32, i32, i32
  }
}

</mosaic_0001>

<llo_original>
// kernel: tpu_custom_call.1
$region0: #{tpu_custom_call.1}
  #allocation0 [shape = 'u32[]', space=smem, size = 0x4, offset = 0x4, fixed_abs, tag = 'smem constant byte address 0x4 - core index']
  #allocation1 [shape = 'u32[72,128]{1,0:T(1,128)}', space=vmem, size = 0x9000, scoped, tag = 'internal scratch']
  #allocation2 [shape = 'f32[1]{0:T(128)S(6)}', space=smem, size = 0x200, scoped, tag = 'scoped memory for tpu_custom_call.1']
  %s0 = inlined_call_operand.hbm [shape: f32[2,32,256], index: 0, kind: input, shape index: {}]
  %s1 = inlined_call_operand.vmem [shape: f32[40,32], index: 1, kind: input, shape index: {}]
  %s2 = inlined_call_operand.vmem [shape: f32[40,1], index: 2, kind: input, shape index: {}]
  %s3 = inlined_call_operand.<no memory space> [shape: f32[1], index: 3, kind: input, shape index: {}]
  %s4 = inlined_call_operand.hbm [shape: f32[2,32,256], index: 4, kind: output, shape index: {}]
  %s5 = sld [smem:[#allocation0]]
  $region53: #{tpu_custom_call.1} parent=0
    _
  %s7 = ssub.s32 1, %s5
  %s8 = scalar_select 0, %s7, %s5
  %9 = sst [smem:[#allocation2]] %s3
  $region1: #{tpu_custom_call.1} parent=0
    #allocation3 [shape = 'u8[65536]{0}', space=vmem, size = 0x10000, scoped, tag = 'input window, operand 0']
    #allocation4 [shape = 's32[2]{0}', space=sflag, size = 0x8, scoped, tag = 'scoped memory for tpu_custom_call.1']
    #allocation5 [shape = 's32[2]{0}', space=sflag, size = 0x8, scoped, tag = 'scoped memory for tpu_custom_call.1']
    #allocation6 [shape = 'u8[65536]{0}', space=vmem, size = 0x10000, scoped, tag = 'output window, operand 0']
    %10 = vsyncpa [#allocation4], 0
    %s11 = scalar_lea.sflag [#allocation4], 1
    %12 = vsyncpa %s11, 0
    %13 = vsyncpa [#allocation5], 0
    %s14 = scalar_lea.sflag [#allocation5], 1
    %15 = vsyncpa %s14, 0
    loop: start=0, step=1, limit=4
    $region2: #{tpu_custom_call.1} parent=1 // loop_pre_header
      _
    $region3: #{tpu_custom_call.1} parent=1 // loop_header
      %s17 = sphi 0, %s21
      %p18 = scmp.ge.s32.totalorder %s17, 4
      %s27 = sphi 0, %s29
      %s30 = sphi 0, %s27
      %s31 = sphi 0, %s30
      %s47 = sphi 0, %s31
      %s51 = sphi 0, %s51
      %s53 = sphi 0, %s51
      %s54 = sphi 0, %s53
      %s68 = sphi 0, %s54
      %s72 = sphi 0, %s72
      %s74 = sphi 0, %s72
      %s75 = sphi 0, %s74
      %s89 = sphi 0, %s75
      %s93 = sphi 0, %s93
      %s95 = sphi 0, %s93
      %s96 = sphi 0, %s95
      %s110 = sphi 0, %s96
      %s116 = sphi 0, %s118
      %s119 = sphi 0, %s116
      %s120 = sphi 0, %s119
      %s136 = sphi 0, %s120
    $region4: #{tpu_custom_call.1} parent=1 // loop_header_branch
      %20 = sbr.rel (%p18) target = $region8
    $region5: #{tpu_custom_call.1} parent=1 // loop_body
      %s22 = ssub.s32 %s17, 1
      %s23 = ssub.s32 %s17, 2
      %s24 = sadd.s32 %s17, 1
      %s25 = ssub.s32 %s17, %s24
      %p26 = scmp.eq.s32.totalorder %s25, 0
      %s28 = sadd.s32 %s27, 1
      %s29 = scalar_select %p26, %s27, %s28
      %p32 = pneg %p26
      %p33 = scmp.eq.s32.totalorder %s17, 1
      %p34 = por %p32, %p33
      %p35 = scmp.ne.s32.totalorder %s27, %s30
      %p36 = scmp.eq.s32.totalorder %s17, 0
      %p37 = por %p35, %p36
      %p38 = scmp.ne.s32.totalorder %s27, %s30
      %p39 = scmp.eq.s32.totalorder %s22, 1
      %p40 = por %p38, %p39
      %p41 = scmp.ne.s32.totalorder %s30, %s31
      %p42 = scmp.eq.s32.totalorder %s22, 0
      %p43 = por %p41, %p42
      %p44 = scmp.ne.s32.totalorder %s30, %s31
      %p45 = scmp.eq.s32.totalorder %s23, 1
      %p46 = por %p44, %p45
      %p48 = scmp.ne.s32.totalorder %s31, %s47
      %p49 = scmp.eq.s32.totalorder %s23, 0
      %p50 = por %p48, %p49
      %s52 = sadd.s32 %s51, 1
      %p55 = scmp.eq.s32.totalorder %s17, 1
      %p56 = scmp.ne.s32.totalorder %s51, %s53
      %p57 = scmp.eq.s32.totalorder %s17, 0
      %p58 = por %p56, %p57
      %p59 = scmp.ne.s32.totalorder %s51, %s53
      %p60 = scmp.eq.s32.totalorder %s22, 1
      %p61 = por %p59, %p60
      %p62 = scmp.ne.s32.totalorder %s53, %s54
      %p63 = scmp.eq.s32.totalorder %s22, 0
      %p64 = por %p62, %p63
      %p65 = scmp.ne.s32.totalorder %s53, %s54
      %p66 = scmp.eq.s32.totalorder %s23, 1
      %p67 = por %p65, %p66
      %p69 = scmp.ne.s32.totalorder %s54, %s68
      %p70 = scmp.eq.s32.totalorder %s23, 0
      %p71 = por %p69, %p70
      %s73 = sadd.s32 %s72, 1
      %p76 = scmp.eq.s32.totalorder %s17, 1
      %p77 = scmp.ne.s32.totalorder %s72, %s74
      %p78 = scmp.eq.s32.totalorder %s17, 0
      %p79 = por %p77, %p78
      %p80 = scmp.ne.s32.totalorder %s72, %s74
      %p81 = scmp.eq.s32.totalorder %s22, 1
      %p82 = por %p80, %p81
      %p83 = scmp.ne.s32.totalorder %s74, %s75
      %p84 = scmp.eq.s32.totalorder %s22, 0
      %p85 = por %p83, %p84
      %p86 = scmp.ne.s32.totalorder %s74, %s75
      %p87 = scmp.eq.s32.totalorder %s23, 1
      %p88 = por %p86, %p87
      %p90 = scmp.ne.s32.totalorder %s75, %s89
      %p91 = scmp.eq.s32.totalorder %s23, 0
      %p92 = por %p90, %p91
      %s94 = sadd.s32 %s93, 1
      %p97 = scmp.eq.s32.totalorder %s17, 1
      %p98 = scmp.ne.s32.totalorder %s93, %s95
      %p99 = scmp.eq.s32.totalorder %s17, 0
      %p100 = por %p98, %p99
      %p101 = scmp.ne.s32.totalorder %s93, %s95
      %p102 = scmp.eq.s32.totalorder %s22, 1
      %p103 = por %p101, %p102
      %p104 = scmp.ne.s32.totalorder %s95, %s96
      %p105 = scmp.eq.s32.totalorder %s22, 0
      %p106 = por %p104, %p105
      %p107 = scmp.ne.s32.totalorder %s95, %s96
      %p108 = scmp.eq.s32.totalorder %s23, 1
      %p109 = por %p107, %p108
      %p111 = scmp.ne.s32.totalorder %s96, %s110
      %p112 = scmp.eq.s32.totalorder %s23, 0
      %p113 = por %p111, %p112
      %s114 = ssub.s32 %s17, %s24
      %p115 = scmp.eq.s32.totalorder %s114, 0
      %s117 = sadd.s32 %s116, 1
      %s118 = scalar_select %p115, %s116, %s117
      %p121 = pneg %p115
      %p122 = scmp.eq.s32.totalorder %s17, 1
      %p123 = por %p121, %p122
      %p124 = scmp.ne.s32.totalorder %s116, %s119
      %p125 = scmp.eq.s32.totalorder %s17, 0
      %p126 = por %p124, %p125
      %p127 = scmp.ne.s32.totalorder %s116, %s119
      %p128 = scmp.eq.s32.totalorder %s22, 1
      %p129 = por %p127, %p128
      %p130 = scmp.ne.s32.totalorder %s119, %s120
      %p131 = scmp.eq.s32.totalorder %s22, 0
      %p132 = por %p130, %p131
      %p133 = scmp.ne.s32.totalorder %s119, %s120
      %p134 = scmp.eq.s32.totalorder %s23, 1
      %p135 = por %p133, %p134
      %p137 = scmp.ne.s32.totalorder %s120, %s136
      %p138 = scmp.eq.s32.totalorder %s23, 0
      %p139 = por %p137, %p138
      %p140 = scmp.le.s32.totalorder 1, %s17
      %p141 = scmp.lt.s32.totalorder %s17, 3
      %p142 = pnand %p140, %p141
      %p143 = pneg %p142
      // Predicated region
      $region9: #{tpu_custom_call.1} parent=5 // pred_check
        _
      $region10: #{tpu_custom_call.1} parent=5 // pred_check_branch
        %145 = sbr.rel (%p142) target = $region12
      $region11: #{tpu_custom_call.1} parent=5 // pred_region
        %s146 = ssub.s32 %s17, 1
        // Predicated region
        $region13: #{tpu_custom_call.1} parent=11 // pred_check
          %p147 = pneg %p64
        $region14: #{tpu_custom_call.1} parent=11 // pred_check_branch
          %149 = sbr.rel (%p147) target = $region16
        $region15: #{tpu_custom_call.1} parent=11 // pred_region
          _
        $region16: #{tpu_custom_call.1} parent=11 // pred_fallthru
          _
        // Predicated region
        $region17: #{tpu_custom_call.1} parent=11 // pred_check
          %p150 = pneg %p85
        $region18: #{tpu_custom_call.1} parent=11 // pred_check_branch
          %152 = sbr.rel (%p150) target = $region20
        $region19: #{tpu_custom_call.1} parent=11 // pred_region
          _
        $region20: #{tpu_custom_call.1} parent=11 // pred_fallthru
          _
        // Predicated region
        $region21: #{tpu_custom_call.1} parent=11 // pred_check
          %p153 = pneg %p106
        $region22: #{tpu_custom_call.1} parent=11 // pred_check_branch
          %155 = sbr.rel (%p153) target = $region24
        $region23: #{tpu_custom_call.1} parent=11 // pred_region
          _
        $region24: #{tpu_custom_call.1} parent=11 // pred_fallthru
          _
      $region12: #{tpu_custom_call.1} parent=5 // pred_fallthru
        _
      %p156 = scmp.lt.s32.totalorder %s17, 2
      // Predicated region
      $region25: #{tpu_custom_call.1} parent=5 // pred_check
        %p157 = pneg %p156
      $region26: #{tpu_custom_call.1} parent=5 // pred_check_branch
        %159 = sbr.rel (%p157) target = $region28
      $region27: #{tpu_custom_call.1} parent=5 // pred_region
        // Predicated region
        $region29: #{tpu_custom_call.1} parent=27 // pred_check
          %p160 = pneg %p37
        $region30: #{tpu_custom_call.1} parent=27 // pred_check_branch
          %162 = sbr.rel (%p160) target = $region32
        $region31: #{tpu_custom_call.1} parent=27 // pred_region
          %s163 = sand.u32 %s27, 1
          %s164 = scalar_lea.sflag [#allocation4], %s163
          %s165 = sand.u32 %s27, 1
          %s166 = smul.addr %s165, 64
          %s167 = scalar_lea.vmem [#allocation3], %s166
          %169 = vsyncadd %s164, 0
          %s170 = smul.addr %s17, 8
          %s171 = smul.addr %s170, 8
          %s172 = scalar_lea.hbm %s0, %s171
          %s173 = sshll.u32 %s172, 4
          %s174 = int_to_ptr.hbm [resolvable:$true] %s173
          %s175 = sshll.u32 %s167, 4
          %s176 = int_to_ptr.vmem [resolvable:$true] %s175
          %181 = dma.hbm_to_vmem [thread:$0]  %s174, 1024, %s176, %s164, 256, 256, 16
        $region32: #{tpu_custom_call.1} parent=27 // pred_fallthru
          _
      $region28: #{tpu_custom_call.1} parent=5 // pred_fallthru
        _
      %p182 = scmp.le.s32.totalorder 1, %s17
      %p183 = scmp.lt.s32.totalorder %s17, 3
      %p184 = pnand %p182, %p183
      %p185 = pneg %p184
      // Predicated region
      $region33: #{tpu_custom_call.1} parent=5 // pred_check
        _
      $region34: #{tpu_custom_call.1} parent=5 // pred_check_branch
        %187 = sbr.rel (%p184) target = $region36
      $region35: #{tpu_custom_call.1} parent=5 // pred_region
        %s188 = ssub.s32 %s17, 1
        %s189 = sand.u32 %s30, 1
        %s190 = scalar_lea.sflag [#allocation4], %s189
        %s191 = sand.u32 %s30, 1
        %s192 = smul.addr %s191, 64
        %s193 = scalar_lea.vmem [#allocation3], %s192
        // Predicated region
        $region37: #{tpu_custom_call.1} parent=35 // pred_check
          %p194 = pneg %p43
        $region38: #{tpu_custom_call.1} parent=35 // pred_check_branch
          %196 = sbr.rel (%p194) target = $region40
        $region39: #{tpu_custom_call.1} parent=35 // pred_region
          %198 = dma.done %s190, 1024
        $region40: #{tpu_custom_call.1} parent=35 // pred_fallthru
          _
        %s199 = sand.u32 %s30, 1
        %s200 = scalar_lea.sflag [#allocation4], %s199
        %s201 = sand.u32 %s30, 1
        %s202 = smul.addr %s201, 64
        %s203 = scalar_lea.vmem [#allocation3], %s202
        %p204 = pneg %p43
        %p205 = pneg %p40
        %p206 = pneg %p64
        %p207 = pneg %p61
        %p208 = pneg %p85
        %p209 = pneg %p82
        %p210 = pneg %p106
        %p211 = pneg %p103
        %p212 = pneg %p132
        %p213 = pneg %p129
        %s214 = sand.u32 %s119, 1
        %s215 = scalar_lea.sflag [#allocation5], %s214
        %s216 = sand.u32 %s119, 1
        %s217 = smul.addr %s216, 64
        %s218 = scalar_lea.vmem [#allocation6], %s217
        %v219 = vld [vmem:[%s193] sm:$0xff]
        %v220 = vld [vmem:[%s193 + $0x8] sm:$0xff]
        %v221 = vld [vmem:[%s193 + $0x10] sm:$0xff]
        %v222 = vld [vmem:[%s193 + $0x18] sm:$0xff]
        %v223 = vld [vmem:[%s193 + $0x20] sm:$0xff]
        %v224 = vld [vmem:[%s193 + $0x28] sm:$0xff]
        %v225 = vld [vmem:[%s193 + $0x30] sm:$0xff]
        %v226 = vld [vmem:[%s193 + $0x38] sm:$0xff]
        %v227 = vld [vmem:[%s1] sm:$0xff]
        %v228 = vld [vmem:[%s1 + $0x8] sm:$0xff]
        %v229 = vld [vmem:[%s1 + $0x10] sm:$0xff]
        %v230 = vld [vmem:[%s1 + $0x18] sm:$0xff]
        %v231 = vld [vmem:[%s1 + $0x20] sm:$0xff]
        %v232 = vld [vmem:[%s2] sm:$0xff]
        %v233 = vld [vmem:[%s2 + $0x8] sm:$0xff]
        %v234 = vld [vmem:[%s2 + $0x10] sm:$0xff]
        %v235 = vld [vmem:[%s2 + $0x18] sm:$0xff]
        %v236 = vld [vmem:[%s2 + $0x20] sm:$0xff]
        %238 = vset.pattern.permute.xlu0 0
        %239 = vperm.xlu0 %238, %v232
        %v240 = vpop.permute.xlu0 %239
        %243 = vset.pattern.permute.xlu0 0
        %244 = vperm.xlu0 %243, %v233
        %v245 = vpop.permute.xlu0 %244
        %248 = vset.pattern.permute.xlu0 0
        %249 = vperm.xlu0 %248, %v234
        %v250 = vpop.permute.xlu0 %249
        %253 = vset.pattern.permute.xlu0 0
        %254 = vperm.xlu0 %253, %v235
        %v255 = vpop.permute.xlu0 %254
        %258 = vset.pattern.permute.xlu0 0
        %259 = vperm.xlu0 %258, %v236
        %v260 = vpop.permute.xlu0 %259
        %vm262 = vcmask 261120
        %v264 = vsel %vm262, %v227, 0
        %v267 = vsel %vm262, %v228, 0
        %v270 = vsel %vm262, %v229, 0
        %v273 = vsel %vm262, %v230, 0
        %v276 = vsel %vm262, %v231, 0
        %278 = vmatpush.msra.mxu0 0.0
        %279 = vmatpush.msra.mxu0 0.0
        %280 = vmatpush.msra.mxu0 0.0
        %281 = vmatpush.msra.mxu0 0.0
        %282 = vmatpush.msra.mxu0 0.0
        %283 = vmatpush.msra.mxu0 0.0
        %284 = vmatpush.msra.mxu0 0.0
        %285 = vmatpush.msra.mxu0 0.0
        %286 = vmatpush.msra.mxu0 0.0
        %287 = vmatpush.msra.mxu0 0.0
        %288 = vmatpush.msra.mxu0 0.0
        %289 = vmatpush.msra.mxu0 0.0
        %290 = vmatpush.msra.mxu0 %v225
        %291 = vmatpush.msra.mxu0 %v223
        %292 = vmatpush.msra.mxu0 %v221
        %293 = vmatpush.msra.mxu0 %v219
        %294 = vmatmul.f32.gmra.mxu0 %v264
        %v295 = vpop.f32.mrf.mxu0
        %v296 = vadd.f32 %v240, %v295
        %297 = vmatmul.f32.gmra.mxu0 %v267
        %v298 = vpop.f32.mrf.mxu0
        %v299 = vadd.f32 %v245, %v298
        %300 = vmatmul.f32.gmra.mxu0 %v270
        %v301 = vpop.f32.mrf.mxu0
        %v302 = vadd.f32 %v250, %v301
        %303 = vmatmul.f32.gmra.mxu0 %v273
        %v304 = vpop.f32.mrf.mxu0
        %v305 = vadd.f32 %v255, %v304
        %306 = vmatmul.f32.gmra.mxu0 %v276
        %v307 = vpop.f32.mrf.mxu0
        %v308 = vadd.f32 %v260, %v307
        %309 = vdwg.mxu0
        %310 = vmatpush.msra.mxu0 0.0
        %311 = vmatpush.msra.mxu0 0.0
        %312 = vmatpush.msra.mxu0 0.0
        %313 = vmatpush.msra.mxu0 0.0
        %314 = vmatpush.msra.mxu0 0.0
        %315 = vmatpush.msra.mxu0 0.0
        %316 = vmatpush.msra.mxu0 0.0
        %317 = vmatpush.msra.mxu0 0.0
        %318 = vmatpush.msra.mxu0 0.0
        %319 = vmatpush.msra.mxu0 0.0
        %320 = vmatpush.msra.mxu0 0.0
        %321 = vmatpush.msra.mxu0 0.0
        %322 = vmatpush.msra.mxu0 %v226
        %323 = vmatpush.msra.mxu0 %v224
        %324 = vmatpush.msra.mxu0 %v222
        %325 = vmatpush.msra.mxu0 %v220
        %326 = vmatmul.f32.gmra.mxu0 %v264
        %v327 = vpop.f32.mrf.mxu0
        %v328 = vadd.f32 %v240, %v327
        %329 = vmatmul.f32.gmra.mxu0 %v267
        %v330 = vpop.f32.mrf.mxu0
        %v331 = vadd.f32 %v245, %v330
        %332 = vmatmul.f32.gmra.mxu0 %v270
        %v333 = vpop.f32.mrf.mxu0
        %v334 = vadd.f32 %v250, %v333
        %335 = vmatmul.f32.gmra.mxu0 %v273
        %v336 = vpop.f32.mrf.mxu0
        %v337 = vadd.f32 %v255, %v336
        %338 = vmatmul.f32.gmra.mxu0 %v276
        %v339 = vpop.f32.mrf.mxu0
        %v340 = vadd.f32 %v260, %v339
        %341 = vdwg.mxu0
        %v342 = vmul.f32 %v308, %v308
        %v343 = vmul.f32 %v340, %v340
        %vm344 = vcmask 1043456
        %v345 = vsel %vm344, %v342, 0.0
        %v346 = vrot.slane %v345, 4
        %v347 = vadd.f32 %v345, %v346
        %v348 = vrot.slane %v347, 2
        %v349 = vadd.f32 %v347, %v348
        %v350 = vrot.slane %v349, 1
        %v351 = vadd.f32 %v349, %v350
        %v352 = vsel %vm344, %v343, 0.0
        %v353 = vrot.slane %v352, 4
        %v354 = vadd.f32 %v352, %v353
        %v355 = vrot.slane %v354, 2
        %v356 = vadd.f32 %v354, %v355
        %v357 = vrot.slane %v356, 1
        %v358 = vadd.f32 %v356, %v357
        %v359 = vrsqrt.pop %v351
        %v360 = vmul.f32 %v359, %v351
        %v361 = vmul.f32 %v360, %v359
        %v362 = vmul.f32 0.5, %v361
        %v363 = vsub.f32 1.5, %v362
        %v364 = vmul.f32 %v359, %v363
        %vm365 = vweird.f32 %v351
        %vm366 = vweird.f32 %v359
        %vm367 = vmor %vm365, %vm366
        %v368 = vsel %vm367, %v359, %v364
        %v369 = vrsqrt.pop %v358
        %v370 = vmul.f32 %v369, %v358
        %v371 = vmul.f32 %v370, %v369
        %v372 = vmul.f32 0.5, %v371
        %v373 = vsub.f32 1.5, %v372
        %v374 = vmul.f32 %v369, %v373
        %vm375 = vweird.f32 %v358
        %vm376 = vweird.f32 %v369
        %vm377 = vmor %vm375, %vm376
        %v378 = vsel %vm377, %v369, %v374
        %v379 = vmul.f32 %v308, %v368
        %v380 = vmul.f32 %v340, %v378
        %v383 = vrot.slane %v342, 4
        %v384 = vrot.slane %v343, 4
        %v387 = vsel %vm344, %v383, 0.0
        %v388 = vrot.slane %v387, 4
        %v389 = vadd.f32 %v387, %v388
        %v390 = vrot.slane %v389, 2
        %v391 = vadd.f32 %v389, %v390
        %v392 = vrot.slane %v391, 1
        %v393 = vadd.f32 %v391, %v392
        %v394 = vsel %vm344, %v384, 0.0
        %v395 = vrot.slane %v394, 4
        %v396 = vadd.f32 %v394, %v395
        %v397 = vrot.slane %v396, 2
        %v398 = vadd.f32 %v396, %v397
        %v399 = vrot.slane %v398, 1
        %v400 = vadd.f32 %v398, %v399
        %v401 = vrsqrt.pop %v393
        %v402 = vmul.f32 %v401, %v393
        %v403 = vmul.f32 %v402, %v401
        %v404 = vmul.f32 0.5, %v403
        %v405 = vsub.f32 1.5, %v404
        %v406 = vmul.f32 %v401, %v405
        %vm407 = vweird.f32 %v393
        %vm408 = vweird.f32 %v401
        %vm409 = vmor %vm407, %vm408
        %v410 = vsel %vm409, %v401, %v406
        %v411 = vrsqrt.pop %v400
        %v412 = vmul.f32 %v411, %v400
        %v413 = vmul.f32 %v412, %v411
        %v414 = vmul.f32 0.5, %v413
        %v415 = vsub.f32 1.5, %v414
        %v416 = vmul.f32 %v411, %v415
        %vm417 = vweird.f32 %v400
        %vm418 = vweird.f32 %v411
        %vm419 = vmor %vm417, %vm418
        %v420 = vsel %vm419, %v411, %v416
        %v421 = vmul.f32 %v308, %v410
        %v422 = vmul.f32 %v340, %v420
        %v423 = vsel %vm344, %v379, 0.0
        %v424 = vsel %vm344, %v380, 0.0
        %v425 = vadd.f32 %v423, %v424
        %426 = vadd.xlane.f32.xlu0 %v425
        %v427 = vpop.xlane.xlu0 %426
        %v428 = vadd.f32 %v296, %v328
        %429 = vadd.xlane.f32.xlu0 %v428
        %v430 = vpop.xlane.xlu0 %429
        %v431 = vadd.f32 %v299, %v331
        %432 = vadd.xlane.f32.xlu0 %v431
        %v433 = vpop.xlane.xlu0 %432
        %v434 = vadd.f32 %v302, %v334
        %435 = vadd.xlane.f32.xlu0 %v434
        %v436 = vpop.xlane.xlu0 %435
        %v437 = vadd.f32 %v305, %v337
        %438 = vadd.xlane.f32.xlu0 %v437
        %v439 = vpop.xlane.xlu0 %438
        %440 = vmatpush.xpose.msra.mxu0 0.0
        %441 = vmatpush.xpose.msra.mxu0 0.0
        %442 = vmatpush.xpose.msra.mxu0 0.0
        %443 = vmatpush.xpose.msra.mxu0 0.0
        %444 = vmatpush.xpose.msra.mxu0 0.0
        %445 = vmatpush.xpose.msra.mxu0 0.0
        %446 = vmatpush.xpose.msra.mxu0 0.0
        %447 = vmatpush.xpose.msra.mxu0 0.0
        %448 = vmatpush.xpose.msra.mxu0 0.0
        %449 = vmatpush.xpose.msra.mxu0 0.0
        %450 = vmatpush.xpose.msra.mxu0 0.0
        %451 = vmatpush.xpose.msra.mxu0 0.0
        %452 = vmatpush.xpose.msra.mxu0 %v305
        %453 = vmatpush.xpose.msra.mxu0 %v302
        %454 = vmatpush.xpose.msra.mxu0 %v299
        %455 = vmatpush.xpose.msra.mxu0 %v296
        %456 = vmatmul.f32.gmra.mxu0 %v379
        %v457 = vpop.f32.mrf.mxu0
        %v458 = vadd.f32 0.0, %v457
        %459 = vdwg.mxu0
        %460 = vmatpush.xpose.msra.mxu0 0.0
        %461 = vmatpush.xpose.msra.mxu0 0.0
        %462 = vmatpush.xpose.msra.mxu0 0.0
        %463 = vmatpush.xpose.msra.mxu0 0.0
        %464 = vmatpush.xpose.msra.mxu0 0.0
        %465 = vmatpush.xpose.msra.mxu0 0.0
        %466 = vmatpush.xpose.msra.mxu0 0.0
        %467 = vmatpush.xpose.msra.mxu0 0.0
        %468 = vmatpush.xpose.msra.mxu0 0.0
        %469 = vmatpush.xpose.msra.mxu0 0.0
        %470 = vmatpush.xpose.msra.mxu0 0.0
        %471 = vmatpush.xpose.msra.mxu0 0.0
        %472 = vmatpush.xpose.msra.mxu0 %v337
        %473 = vmatpush.xpose.msra.mxu0 %v334
        %474 = vmatpush.xpose.msra.mxu0 %v331
        %475 = vmatpush.xpose.msra.mxu0 %v328
        %476 = vmatmul.f32.gmra.mxu0 %v380
        %v477 = vpop.f32.mrf.mxu0
        %v478 = vadd.f32 %v458, %v477
        %479 = vdwg.mxu0
        %v480 = vadd.f32 %v427, 1e-06
        %v482 = vrot.slane %v480, 4
        %v484 = vmul.f32 %v421, %v482
        %v485 = vmul.f32 %v422, %v482
        %v488 = vrot.slane %v484, 4
        %v489 = vrot.slane %v485, 4
        %v492 = vsel %vm344, %v488, 0.0
        %v493 = vrot.slane %v492, 4
        %v494 = vadd.f32 %v492, %v493
        %v495 = vrot.slane %v494, 2
        %v496 = vadd.f32 %v494, %v495
        %v497 = vrot.slane %v496, 1
        %v498 = vadd.f32 %v496, %v497
        %v499 = vsel %vm344, %v489, 0.0
        %v500 = vrot.slane %v499, 4
        %v501 = vadd.f32 %v499, %v500
        %v502 = vrot.slane %v501, 2
        %v503 = vadd.f32 %v501, %v502
        %v504 = vrot.slane %v503, 1
        %v505 = vadd.f32 %v503, %v504
        %v506 = vadd.f32 %v498, 256.0
        %v507 = vadd.f32 %v505, 256.0
        %508 = vxpose.xlu0.b32.start [1/16] %v478, 128
        %509 = vxpose.xlu0.b32.cont [2/16] 0.0, 128
        %510 = vxpose.xlu0.b32.cont [3/16] 0.0, 128
        %511 = vxpose.xlu0.b32.cont [4/16] 0.0, 128
        %512 = vxpose.xlu0.b32.cont [5/16] 0.0, 128
        %513 = vxpose.xlu0.b32.cont [6/16] 0.0, 128
        %514 = vxpose.xlu0.b32.cont [7/16] 0.0, 128
        %515 = vxpose.xlu0.b32.cont [8/16] 0.0, 128
        %516 = vxpose.xlu0.b32.cont [9/16] 0.0, 128
        %517 = vxpose.xlu0.b32.cont [10/16] 0.0, 128
        %518 = vxpose.xlu0.b32.cont [11/16] 0.0, 128
        %519 = vxpose.xlu0.b32.cont [12/16] 0.0, 128
        %520 = vxpose.xlu0.b32.cont [13/16] 0.0, 128
        %521 = vxpose.xlu0.b32.cont [14/16] 0.0, 128
        %522 = vxpose.xlu0.b32.cont [15/16] 0.0, 128
        %523 = vxpose.xlu0.b32.end [16/16] 0.0, 128
        %v524 = vpop.trf.xlu0
        %v525 = vpop.trf.xlu0
        %v526 = vpop.trf.xlu0
        %v527 = vpop.trf.xlu0
        %v528 = vpop.trf.xlu0
        %v529 = vpop.trf.xlu0
        %v530 = vpop.trf.xlu0
        %v531 = vpop.trf.xlu0
        %v532 = vpop.trf.xlu0
        %v533 = vpop.trf.xlu0
        %v534 = vpop.trf.xlu0
        %v535 = vpop.trf.xlu0
        %v536 = vpop.trf.xlu0
        %v537 = vpop.trf.xlu0
        %v538 = vpop.trf.xlu0
        %v539 = vpop.trf.xlu0
        %v542 = vrot.slane %v421, 4
        %v543 = vrot.slane %v422, 4
        %vm544 = vcmask 31744
        %v546 = vsel %vm544, %v524, 0
        %v549 = vsel %vm544, %v525, 0
        %v552 = vsel %vm544, %v526, 0
        %v555 = vsel %vm544, %v527, 0
        %v557 = vsel %vm344, %v542, 0
        %v559 = vsel %vm344, %v543, 0
        %561 = vmatpush.msra.mxu0 0.0
        %562 = vmatpush.msra.mxu0 0.0
        %563 = vmatpush.msra.mxu0 0.0
        %564 = vmatpush.msra.mxu0 0.0
        %565 = vmatpush.msra.mxu0 0.0
        %566 = vmatpush.msra.mxu0 0.0
        %567 = vmatpush.msra.mxu0 0.0
        %568 = vmatpush.msra.mxu0 0.0
        %569 = vmatpush.msra.mxu0 0.0
        %570 = vmatpush.msra.mxu0 0.0
        %571 = vmatpush.msra.mxu0 0.0
        %572 = vmatpush.msra.mxu0 0.0
        %573 = vmatpush.msra.mxu0 0.0
        %574 = vmatpush.msra.mxu0 0.0
        %575 = vmatpush.msra.mxu0 0.0
        %576 = vmatpush.msra.mxu0 %v557
        %577 = vmatmul.f32.gmra.mxu0 %v546
        %v578 = vpop.f32.mrf.mxu0
        %v579 = vadd.f32 0.0, %v578
        %580 = vmatmul.f32.gmra.mxu0 %v549
        %v581 = vpop.f32.mrf.mxu0
        %v582 = vadd.f32 0.0, %v581
        %583 = vmatmul.f32.gmra.mxu0 %v552
        %v584 = vpop.f32.mrf.mxu0
        %v585 = vadd.f32 0.0, %v584
        %586 = vmatmul.f32.gmra.mxu0 %v555
        %v587 = vpop.f32.mrf.mxu0
        %v588 = vadd.f32 0.0, %v587
        %589 = vdwg.mxu0
        %590 = vmatpush.msra.mxu0 0.0
        %591 = vmatpush.msra.mxu0 0.0
        %592 = vmatpush.msra.mxu0 0.0
        %593 = vmatpush.msra.mxu0 0.0
        %594 = vmatpush.msra.mxu0 0.0
        %595 = vmatpush.msra.mxu0 0.0
        %596 = vmatpush.msra.mxu0 0.0
        %597 = vmatpush.msra.mxu0 0.0
        %598 = vmatpush.msra.mxu0 0.0
        %599 = vmatpush.msra.mxu0 0.0
        %600 = vmatpush.msra.mxu0 0.0
        %601 = vmatpush.msra.mxu0 0.0
        %602 = vmatpush.msra.mxu0 0.0
        %603 = vmatpush.msra.mxu0 0.0
        %604 = vmatpush.msra.mxu0 0.0
        %605 = vmatpush.msra.mxu0 %v559
        %606 = vmatmul.f32.gmra.mxu0 %v546
        %v607 = vpop.f32.mrf.mxu0
        %v608 = vadd.f32 0.0, %v607
        %609 = vmatmul.f32.gmra.mxu0 %v549
        %v610 = vpop.f32.mrf.mxu0
        %v611 = vadd.f32 0.0, %v610
        %612 = vmatmul.f32.gmra.mxu0 %v552
        %v613 = vpop.f32.mrf.mxu0
        %v614 = vadd.f32 0.0, %v613
        %615 = vmatmul.f32.gmra.mxu0 %v555
        %v616 = vpop.f32.mrf.mxu0
        %v617 = vadd.f32 0.0, %v616
        %618 = vdwg.mxu0
        %v619 = vrcp.pop %v506
        %v620 = vmul.f32 %v506, %v619
        %v621 = vsub.f32 1.0, %v620
        %v622 = vmul.f32 %v619, %v621
        %v623 = vadd.f32 %v619, %v622
        %vm624 = vweird.f32 %v506
        %vm625 = vweird.f32 %v619
        %vm626 = vmor %vm624, %vm625
        %v627 = vsel %vm626, %v619, %v623
        %v628 = vand.u32 2147483647, %v506
        %vm629 = vcmp.eq.f32.partialorder %v628, 8.507059e+37
        %v630 = vand.u32 %v506, 2147483648
        %v631 = vor.u32 1.1754944e-38, %v630
        %v632 = vsel %vm629, %v631, %v627
        %v633 = vrcp.pop %v507
        %v634 = vmul.f32 %v507, %v633
        %v635 = vsub.f32 1.0, %v634
        %v636 = vmul.f32 %v633, %v635
        %v637 = vadd.f32 %v633, %v636
        %vm638 = vweird.f32 %v507
        %vm639 = vweird.f32 %v633
        %vm640 = vmor %vm638, %vm639
        %v641 = vsel %vm640, %v633, %v637
        %v642 = vand.u32 2147483647, %v507
        %vm643 = vcmp.eq.f32.partialorder %v642, 8.507059e+37
        %v644 = vand.u32 %v507, 2147483648
        %v645 = vor.u32 1.1754944e-38, %v644
        %v646 = vsel %vm643, %v645, %v641
        %s647 = sld [smem:[#allocation2]]
        %v648 = vadd.f32 %v430, %v579
        %v649 = vadd.f32 %v430, %v608
        %v650 = vadd.f32 %v433, %v582
        %v651 = vadd.f32 %v433, %v611
        %v652 = vadd.f32 %v436, %v585
        %v653 = vadd.f32 %v436, %v614
        %v654 = vadd.f32 %v439, %v588
        %v655 = vadd.f32 %v439, %v617
        %v656 = vmul.f32 %v648, %v632
        %v657 = vmul.f32 %v649, %v646
        %v658 = vmul.f32 %v650, %v632
        %v659 = vmul.f32 %v651, %v646
        %v660 = vmul.f32 %v652, %v632
        %v661 = vmul.f32 %v653, %v646
        %v662 = vmul.f32 %v654, %v632
        %v663 = vmul.f32 %v655, %v646
        %v664 = vstv %s647
        %v665 = vmul.f32 %v664, %v656
        %v666 = vmul.f32 %v664, %v657
        %v667 = vmul.f32 %v664, %v658
        %v668 = vmul.f32 %v664, %v659
        %v669 = vmul.f32 %v664, %v660
        %v670 = vmul.f32 %v664, %v661
        %v671 = vmul.f32 %v664, %v662
        %v672 = vmul.f32 %v664, %v663
        %v673 = vadd.f32 %v219, %v665
        %v674 = vadd.f32 %v220, %v666
        %v675 = vadd.f32 %v221, %v667
        %v676 = vadd.f32 %v222, %v668
        %v677 = vadd.f32 %v223, %v669
        %v678 = vadd.f32 %v224, %v670
        %v679 = vadd.f32 %v225, %v671
        %v680 = vadd.f32 %v226, %v672
        %681 = vst [vmem:[%s218] sm:$0xff] %v673
        %682 = vst [vmem:[%s218 + $0x8] sm:$0xff] %v674
        %683 = vst [vmem:[%s218 + $0x10] sm:$0xff] %v675
        %684 = vst [vmem:[%s218 + $0x18] sm:$0xff] %v676
        %685 = vst [vmem:[%s218 + $0x20] sm:$0xff] %v677
        %686 = vst [vmem:[%s218 + $0x28] sm:$0xff] %v678
        %687 = vst [vmem:[%s218 + $0x30] sm:$0xff] %v679
        %688 = vst [vmem:[%s218 + $0x38] sm:$0xff] %v680
        %s689 = sand.u32 %s119, 1
        %s690 = scalar_lea.sflag [#allocation5], %s689
        %s691 = sand.u32 %s119, 1
        %s692 = smul.addr %s691, 64
        %s693 = scalar_lea.vmem [#allocation6], %s692
        // Predicated region
        $region41: #{tpu_custom_call.1} parent=35 // pred_check
          %p694 = pneg %p129
        $region42: #{tpu_custom_call.1} parent=35 // pred_check_branch
          %696 = sbr.rel (%p694) target = $region44
        $region43: #{tpu_custom_call.1} parent=35 // pred_region
          %698 = vsyncadd %s690, 0
          %s699 = smul.addr %s22, 8
          %s700 = smul.addr %s699, 8
          %s701 = scalar_lea.hbm %s4, %s700
          %s702 = sshll.u32 %s693, 4
          %s703 = int_to_ptr.vmem [resolvable:$true] %s702
          %s704 = sshll.u32 %s701, 4
          %s705 = int_to_ptr.hbm [resolvable:$true] %s704
          %710 = dma.vmem_to_hbm [thread:$0]  %s703, 1024, %s705, %s690, 256, 256, 16
        $region44: #{tpu_custom_call.1} parent=35 // pred_fallthru
          _
      $region36: #{tpu_custom_call.1} parent=5 // pred_fallthru
        _
      %p711 = scmp.le.s32.totalorder 2, %s17
      // Predicated region
      $region45: #{tpu_custom_call.1} parent=5 // pred_check
        %p712 = pneg %p711
      $region46: #{tpu_custom_call.1} parent=5 // pred_check_branch
        %714 = sbr.rel (%p712) target = $region48
      $region47: #{tpu_custom_call.1} parent=5 // pred_region
        %s715 = ssub.s32 %s17, 2
        // Predicated region
        $region49: #{tpu_custom_call.1} parent=47 // pred_check
          %p716 = pneg %p135
        $region50: #{tpu_custom_call.1} parent=47 // pred_check_branch
          %718 = sbr.rel (%p716) target = $region52
        $region51: #{tpu_custom_call.1} parent=47 // pred_region
          %s719 = sand.u32 %s120, 1
          %s720 = scalar_lea.sflag [#allocation5], %s719
          %s721 = sand.u32 %s120, 1
          %s722 = smul.addr %s721, 64
          %s723 = scalar_lea.vmem [#allocation6], %s722
          %725 = dma.done %s720, 1024
        $region52: #{tpu_custom_call.1} parent=47 // pred_fallthru
          _
      $region48: #{tpu_custom_call.1} parent=5 // pred_fallthru
        _
    $region6: #{tpu_custom_call.1} parent=1 // loop_footer
      %s21 = sadd.s32 1, %s17
    $region7: #{tpu_custom_call.1} parent=1 // loop_footer_branch
      %16 = sbr.rel target = $region3
    $region8: #{tpu_custom_call.1} parent=1 // loop_exit
      _
    %726 = vsyncpa [#allocation4], 1
    %s727 = scalar_lea.sflag [#allocation4], 1
    %728 = vsyncpa %s727, 1
    %729 = vsyncpa [#allocation5], 1
    %s730 = scalar_lea.sflag [#allocation5], 1
    %731 = vsyncpa %s730, 1

</llo_original>
